<compile_context>
chip_gen: v7x
topology: tpu7x:2x2x1
jax: 0.10.0
libtpu: 0.0.40
codegen_flags: <defaults>
</compile_context>

<pallas_src>
import functools
import math

import jax
import jax.numpy as jnp
from jax.experimental import pallas as pl
from jax.experimental.pallas import tpu as pltpu

_HEADROOM_BYTES = 2 * 1024 * 1024
_MAX_TILE_ROWS = 16 * 1024  # old 1024 cap removed; keep a sane ceiling


def _ln_kernel(x_ref, gamma_ref, beta_ref, o_ref, *, eps, hidden, fold):
    """LayerNorm over each `hidden`-wide lane group; `fold` groups per row."""
    x = x_ref[...].astype(jnp.float32)  # (tile_rows, fold * hidden)
    g = gamma_ref[...]                  # (1, fold * hidden), f32
    b = beta_ref[...]
    # fold is small (<= 8); unrolled at trace time. fold == 1 is the plain,
    # full-lane-width LayerNorm (the real BERT hidden >= 128 path).
    for grp in range(fold):
        sl = slice(grp * hidden, (grp + 1) * hidden)
        xg = x[:, sl]
        u = jnp.mean(xg, axis=-1, keepdims=True)        # mean over hidden
        xc = xg - u
        var = jnp.mean(xc * xc, axis=-1, keepdims=True)  # biased variance
        y = xc * jax.lax.rsqrt(var + eps)
        o_ref[:, sl] = (g[:, sl] * y + b[:, sl]).astype(o_ref.dtype)


def _chip_params():
    """Best-effort per-generation knobs: (target_tile_bytes, vmem_budget_bytes)."""
    vmem_cap = 128 * 1024 * 1024
    try:
        vmem_cap = int(pltpu.get_tpu_info().vmem_capacity_bytes)
    except Exception:
        pass
    kind = ""
    try:
        kind = jax.devices()[0].device_kind.lower()
    except Exception:
        pass
    if vmem_cap <= 64 * 1024 * 1024:
        # v7x-class: 3.2 TB/s HBM makes the ~0.35 us grid-step overhead
        # proportionally expensive -> want big tiles, but VMEM is only 64 MiB.
        target_tile = 8 * 1024 * 1024
    elif "v5" in kind:
        # v5e: ~0.82 TB/s; 4 MiB tiles already keep per-step overhead <4%.
        target_tile = 4 * 1024 * 1024
    else:
        # v6e and default: 128 MiB VMEM, ~1.4 TB/s HBM.
        target_tile = 8 * 1024 * 1024
    # Never request all of physical VMEM: leave headroom for Mosaic internal
    # scratch, semaphores and DMA descriptors (matters most on v7x's 64 MiB).
    vmem_budget = (3 * vmem_cap) // 4
    return target_tile, vmem_budget


def _choose_tile_rows(rows, lanes, itemsize, params_bytes):
    """Row tile bounded by per-chip DMA target and VMEM budget (f32 temps incl.)."""
    target_tile, vmem_budget = _chip_params()
    if rows < 8:
        return max(1, rows), vmem_budget  # single full block (dim == array dim)
    # Per-row VMEM cost: double-buffered input + output tiles in the input
    # dtype, plus ~4 full-tile float32 temporaries materialized in the kernel
    # (cast / centered / squared / scaled) regardless of the input dtype.
    bytes_per_row = lanes * (4 * itemsize + 4 * 4)
    budget_rows = (vmem_budget - params_bytes - _HEADROOM_BYTES) // bytes_per_row
    target_rows = target_tile // max(1, lanes * itemsize)
    tr = min(budget_rows, target_rows, _MAX_TILE_ROWS)
    tr = max(8, (tr // 8) * 8)                 # multiple of 8 sublanes, >= 8
    tr = min(tr, ((rows + 7) // 8) * 8)        # don't exceed (padded) row extent
    # v7x has 2 TensorCores per chip: make sure the "parallel" grid has at
    # least 2 steps so both get work (cheap no-op on single-TC v5e/v6e).
    if rows >= 16 and pl.cdiv(rows, tr) < 2:
        tr = max(8, ((((rows + 1) // 2) + 7) // 8) * 8)
    return int(tr), vmem_budget


def bert_layer_norm(x, gamma, beta, *, eps=1e-12, tile_rows=None):
    """x: (..., hidden); gamma, beta: (hidden,). Returns same shape/dtype as x."""
    orig_shape = x.shape
    hidden = int(orig_shape[-1])
    rows = int(math.prod(orig_shape[:-1])) if len(orig_shape) > 1 else 1

    # Lane folding for narrow hidden: fold `fold` consecutive rows into the
    # 128-lane dimension so DMA and output stores are lane-dense (unmasked).
    # Only when rows divide evenly (no extra HBM pass for padding).
    fold = 1
    if hidden < 128 and 128 % hidden == 0:
        f = 128 // hidden
        if f <= 8 and rows >= f and rows % f == 0:
            fold = f
    lanes = fold * hidden
    rows_f = rows // fold

    x2 = x.reshape(rows_f, lanes)
    # Pre-cast params to f32 once (no per-tile casts) and tile across folded groups.
    g2 = jnp.tile(gamma.astype(jnp.float32).reshape(1, hidden), (1, fold))
    b2 = jnp.tile(beta.astype(jnp.float32).reshape(1, hidden), (1, fold))

    itemsize = jnp.dtype(x.dtype).itemsize
    params_bytes = 2 * lanes * 4

    if tile_rows is None:
        tile_rows, vmem_budget = _choose_tile_rows(rows_f, lanes, itemsize, params_bytes)
    else:
        _, vmem_budget = _chip_params()
        tile_rows = int(tile_rows)
        if rows_f >= 8:
            tile_rows = max(8, (tile_rows // 8) * 8)
        else:
            tile_rows = rows_f

    # Fixed tile + cdiv grid; Pallas masks the partial last block. Rows are
    # independent (all reductions are lane-axis only), so padded rows in the
    # final tile cannot contaminate valid rows.
    grid = (pl.cdiv(rows_f, tile_rows),)

    # Scoped-VMEM budget: 2x double-buffered in + out tiles (input dtype), ~4
    # full-tile f32 temporaries, resident params, plus headroom; clamped to
    # 75% of physical VMEM (never the whole thing).
    tile_io = tile_rows * lanes * itemsize
    tile_f32 = tile_rows * lanes * 4
    vmem_need = 4 * tile_io + 4 * tile_f32 + 2 * params_bytes + _HEADROOM_BYTES
    vmem_limit = int(min(max(vmem_need, 16 * 1024 * 1024), vmem_budget))

    kernel = functools.partial(_ln_kernel, eps=eps, hidden=hidden, fold=fold)

    out = pl.pallas_call(
        kernel,
        out_shape=jax.ShapeDtypeStruct((rows_f, lanes), x.dtype),
        grid_spec=pltpu.PrefetchScalarGridSpec(
            num_scalar_prefetch=0,
            grid=grid,
            in_specs=[
                pl.BlockSpec((tile_rows, lanes), lambda i: (i, 0)),
                pl.BlockSpec((1, lanes), lambda i: (0, 0)),   # gamma: resident
                pl.BlockSpec((1, lanes), lambda i: (0, 0)),   # beta: resident
            ],
            out_specs=pl.BlockSpec((tile_rows, lanes), lambda i: (i, 0)),
        ),
        compiler_params=pltpu.CompilerParams(
            dimension_semantics=("parallel",),
            vmem_limit_bytes=vmem_limit,
        ),
    )(x2, g2, b2)

    return out.reshape(orig_shape)


def _reference(x, gamma, beta, eps=1e-12):
    u = jnp.mean(x, axis=-1, keepdims=True)
    s = jnp.mean((x - u) ** 2, axis=-1, keepdims=True)
    return gamma * ((x - u) / jnp.sqrt(s + eps)) + beta


if __name__ == "__main__":
    # Small shapes implied by the module: (batch, seq, hidden), LN over hidden.
    batch, seq, hidden = 2, 8, 32
    key = jax.random.PRNGKey(0)
    x = jax.random.normal(key, (batch, seq, hidden), dtype=jnp.float32)

    # nn.Parameter(torch.ones(hidden)) / torch.zeros(hidden)
    gamma = jnp.ones((hidden,), dtype=jnp.float32)
    beta = jnp.zeros((hidden,), dtype=jnp.float32)

    # Folded path (rows = 16 is a multiple of fold = 4).
    y = jax.block_until_ready(bert_layer_norm(x, gamma, beta, eps=1e-12))
    ref = _reference(x, gamma, beta)
    assert jnp.allclose(y, ref, atol=1e-5, rtol=1e-5), "mismatch vs reference"

    # Non-divisible row count -> non-folded fallback + 2-step grid + partial block.
    rows_odd = 3 * 7  # 21 rows, not a multiple of fold (4) nor of 8 sublanes
    x_odd = jax.random.normal(jax.random.PRNGKey(1), (rows_odd, hidden),
                              dtype=jnp.float32)
    y_odd = jax.block_until_ready(bert_layer_norm(x_odd, gamma, beta, eps=1e-12))
    ref_odd = _reference(x_odd, gamma, beta)
    assert jnp.allclose(y_odd, ref_odd, atol=1e-5, rtol=1e-5), "mismatch (odd rows)"

    # Folded path with a partial (masked) last block: rows = 40 -> rows_f = 10.
    x_f = jax.random.normal(jax.random.PRNGKey(2), (5, 8, hidden), dtype=jnp.float32)
    y_f = jax.block_until_ready(bert_layer_norm(x_f, gamma, beta, eps=1e-12))
    ref_f = _reference(x_f, gamma, beta)
    assert jnp.allclose(y_f, ref_f, atol=1e-5, rtol=1e-5), "mismatch (folded partial)"

    print("KERNEL_OK")
</pallas_src>

<mosaic_0001>
module attributes {stable_mosaic.version = 11 : i64} {
  func.func @_ln_kernel(%arg0: i32, %arg1: memref<4x128xf32, #tpu.memory_space<vmem>>, %arg2: memref<1x128xf32, #tpu.memory_space<vmem>>, %arg3: memref<1x128xf32, #tpu.memory_space<vmem>>, %arg4: memref<4x128xf32, #tpu.memory_space<vmem>>) attributes {dimension_semantics = [#tpu.dimension_semantics<parallel>], iteration_bounds = array<i64: 1>, scalar_prefetch = 0 : i64, scratch_operands = 0 : i64, tpu.core_type = #tpu.core_type<tc>, window_params = [{transform_indices = @transform_0, window_bounds = array<i64: 4, 128>}, {pipeline_mode = #tpu.pipeline_mode<synchronous>, transform_indices = @transform_1, window_bounds = array<i64: 1, 128>}, {pipeline_mode = #tpu.pipeline_mode<synchronous>, transform_indices = @transform_2, window_bounds = array<i64: 1, 128>}, {transform_indices = @transform_3, window_bounds = array<i64: 4, 128>}]} {
    %c0 = arith.constant 0 : index
    %c0_0 = arith.constant 0 : index
    %0 = vector.load %arg1[%c0, %c0_0] : memref<4x128xf32, #tpu.memory_space<vmem>>, vector<4x128xf32>
    %c0_1 = arith.constant 0 : index
    %c0_2 = arith.constant 0 : index
    %1 = vector.load %arg2[%c0_1, %c0_2] : memref<1x128xf32, #tpu.memory_space<vmem>>, vector<1x128xf32>
    %c0_3 = arith.constant 0 : index
    %c0_4 = arith.constant 0 : index
    %2 = vector.load %arg3[%c0_3, %c0_4] : memref<1x128xf32, #tpu.memory_space<vmem>>, vector<1x128xf32>
    %3 = vector.extract_strided_slice %0 {offsets = [0, 0], sizes = [4, 32], strides = [1, 1]} : vector<4x128xf32> to vector<4x32xf32>
    %cst = arith.constant dense<0.000000e+00> : vector<4xf32>
    %4 = vector.multi_reduction <add>, %3, %cst [1] : vector<4x32xf32> to vector<4xf32>
    %5 = vector.shape_cast %4 : vector<4xf32> to vector<4x1xf32>
    %cst_5 = arith.constant 3.200000e+01 : f32
    %6 = vector.broadcast %cst_5 : f32 to vector<4x1xf32>
    %7 = arith.divf %5, %6 : vector<4x1xf32>
    %8 = vector.broadcast %7 : vector<4x1xf32> to vector<4x32xf32>
    %9 = arith.subf %3, %8 : vector<4x32xf32>
    %10 = arith.mulf %9, %9 : vector<4x32xf32>
    %cst_6 = arith.constant dense<0.000000e+00> : vector<4xf32>
    %11 = vector.multi_reduction <add>, %10, %cst_6 [1] : vector<4x32xf32> to vector<4xf32>
    %12 = vector.shape_cast %11 : vector<4xf32> to vector<4x1xf32>
    %cst_7 = arith.constant 3.200000e+01 : f32
    %13 = vector.broadcast %cst_7 : f32 to vector<4x1xf32>
    %14 = arith.divf %12, %13 : vector<4x1xf32>
    %cst_8 = arith.constant 9.99999996E-13 : f32
    %15 = vector.broadcast %cst_8 : f32 to vector<4x1xf32>
    %16 = arith.addf %14, %15 : vector<4x1xf32>
    %17 = math.rsqrt %16 : vector<4x1xf32>
    %18 = vector.broadcast %17 : vector<4x1xf32> to vector<4x32xf32>
    %19 = arith.mulf %9, %18 : vector<4x32xf32>
    %20 = vector.extract_strided_slice %1 {offsets = [0, 0], sizes = [1, 32], strides = [1, 1]} : vector<1x128xf32> to vector<1x32xf32>
    %21 = vector.broadcast %20 : vector<1x32xf32> to vector<4x32xf32>
    %22 = arith.mulf %21, %19 : vector<4x32xf32>
    %23 = vector.extract_strided_slice %2 {offsets = [0, 0], sizes = [1, 32], strides = [1, 1]} : vector<1x128xf32> to vector<1x32xf32>
    %24 = vector.broadcast %23 : vector<1x32xf32> to vector<4x32xf32>
    %25 = arith.addf %22, %24 : vector<4x32xf32>
    %c0_9 = arith.constant 0 : index
    %c0_10 = arith.constant 0 : index
    %26 = vector.load %arg4[%c0_9, %c0_10] : memref<4x128xf32, #tpu.memory_space<vmem>>, vector<4x32xf32>
    tpu.vector_store %arg4[%c0_9, %c0_10], %25 {strides = array<i32>} : memref<4x128xf32, #tpu.memory_space<vmem>>, vector<4x32xf32>,
    %27 = vector.extract_strided_slice %0 {offsets = [0, 32], sizes = [4, 32], strides = [1, 1]} : vector<4x128xf32> to vector<4x32xf32>
    %cst_11 = arith.constant dense<0.000000e+00> : vector<4xf32>
    %28 = vector.multi_reduction <add>, %27, %cst_11 [1] : vector<4x32xf32> to vector<4xf32>
    %29 = vector.shape_cast %28 : vector<4xf32> to vector<4x1xf32>
    %cst_12 = arith.constant 3.200000e+01 : f32
    %30 = vector.broadcast %cst_12 : f32 to vector<4x1xf32>
    %31 = arith.divf %29, %30 : vector<4x1xf32>
    %32 = vector.broadcast %31 : vector<4x1xf32> to vector<4x32xf32>
    %33 = arith.subf %27, %32 : vector<4x32xf32>
    %34 = arith.mulf %33, %33 : vector<4x32xf32>
    %cst_13 = arith.constant dense<0.000000e+00> : vector<4xf32>
    %35 = vector.multi_reduction <add>, %34, %cst_13 [1] : vector<4x32xf32> to vector<4xf32>
    %36 = vector.shape_cast %35 : vector<4xf32> to vector<4x1xf32>
    %cst_14 = arith.constant 3.200000e+01 : f32
    %37 = vector.broadcast %cst_14 : f32 to vector<4x1xf32>
    %38 = arith.divf %36, %37 : vector<4x1xf32>
    %cst_15 = arith.constant 9.99999996E-13 : f32
    %39 = vector.broadcast %cst_15 : f32 to vector<4x1xf32>
    %40 = arith.addf %38, %39 : vector<4x1xf32>
    %41 = math.rsqrt %40 : vector<4x1xf32>
    %42 = vector.broadcast %41 : vector<4x1xf32> to vector<4x32xf32>
    %43 = arith.mulf %33, %42 : vector<4x32xf32>
    %44 = vector.extract_strided_slice %1 {offsets = [0, 32], sizes = [1, 32], strides = [1, 1]} : vector<1x128xf32> to vector<1x32xf32>
    %45 = vector.broadcast %44 : vector<1x32xf32> to vector<4x32xf32>
    %46 = arith.mulf %45, %43 : vector<4x32xf32>
    %47 = vector.extract_strided_slice %2 {offsets = [0, 32], sizes = [1, 32], strides = [1, 1]} : vector<1x128xf32> to vector<1x32xf32>
    %48 = vector.broadcast %47 : vector<1x32xf32> to vector<4x32xf32>
    %49 = arith.addf %46, %48 : vector<4x32xf32>
    %c0_16 = arith.constant 0 : index
    %c32 = arith.constant 32 : index
    %50 = vector.load %arg4[%c0_16, %c32] : memref<4x128xf32, #tpu.memory_space<vmem>>, vector<4x32xf32>
    tpu.vector_store %arg4[%c0_16, %c32], %49 {strides = array<i32>} : memref<4x128xf32, #tpu.memory_space<vmem>>, vector<4x32xf32>,
    %51 = vector.extract_strided_slice %0 {offsets = [0, 64], sizes = [4, 32], strides = [1, 1]} : vector<4x128xf32> to vector<4x32xf32>
    %cst_17 = arith.constant dense<0.000000e+00> : vector<4xf32>
    %52 = vector.multi_reduction <add>, %51, %cst_17 [1] : vector<4x32xf32> to vector<4xf32>
    %53 = vector.shape_cast %52 : vector<4xf32> to vector<4x1xf32>
    %cst_18 = arith.constant 3.200000e+01 : f32
    %54 = vector.broadcast %cst_18 : f32 to vector<4x1xf32>
    %55 = arith.divf %53, %54 : vector<4x1xf32>
    %56 = vector.broadcast %55 : vector<4x1xf32> to vector<4x32xf32>
    %57 = arith.subf %51, %56 : vector<4x32xf32>
    %58 = arith.mulf %57, %57 : vector<4x32xf32>
    %cst_19 = arith.constant dense<0.000000e+00> : vector<4xf32>
    %59 = vector.multi_reduction <add>, %58, %cst_19 [1] : vector<4x32xf32> to vector<4xf32>
    %60 = vector.shape_cast %59 : vector<4xf32> to vector<4x1xf32>
    %cst_20 = arith.constant 3.200000e+01 : f32
    %61 = vector.broadcast %cst_20 : f32 to vector<4x1xf32>
    %62 = arith.divf %60, %61 : vector<4x1xf32>
    %cst_21 = arith.constant 9.99999996E-13 : f32
    %63 = vector.broadcast %cst_21 : f32 to vector<4x1xf32>
    %64 = arith.addf %62, %63 : vector<4x1xf32>
    %65 = math.rsqrt %64 : vector<4x1xf32>
    %66 = vector.broadcast %65 : vector<4x1xf32> to vector<4x32xf32>
    %67 = arith.mulf %57, %66 : vector<4x32xf32>
    %68 = vector.extract_strided_slice %1 {offsets = [0, 64], sizes = [1, 32], strides = [1, 1]} : vector<1x128xf32> to vector<1x32xf32>
    %69 = vector.broadcast %68 : vector<1x32xf32> to vector<4x32xf32>
    %70 = arith.mulf %69, %67 : vector<4x32xf32>
    %71 = vector.extract_strided_slice %2 {offsets = [0, 64], sizes = [1, 32], strides = [1, 1]} : vector<1x128xf32> to vector<1x32xf32>
    %72 = vector.broadcast %71 : vector<1x32xf32> to vector<4x32xf32>
    %73 = arith.addf %70, %72 : vector<4x32xf32>
    %c0_22 = arith.constant 0 : index
    %c64 = arith.constant 64 : index
    %74 = vector.load %arg4[%c0_22, %c64] : memref<4x128xf32, #tpu.memory_space<vmem>>, vector<4x32xf32>
    tpu.vector_store %arg4[%c0_22, %c64], %73 {strides = array<i32>} : memref<4x128xf32, #tpu.memory_space<vmem>>, vector<4x32xf32>,
    %75 = vector.extract_strided_slice %0 {offsets = [0, 96], sizes = [4, 32], strides = [1, 1]} : vector<4x128xf32> to vector<4x32xf32>
    %cst_23 = arith.constant dense<0.000000e+00> : vector<4xf32>
    %76 = vector.multi_reduction <add>, %75, %cst_23 [1] : vector<4x32xf32> to vector<4xf32>
    %77 = vector.shape_cast %76 : vector<4xf32> to vector<4x1xf32>
    %cst_24 = arith.constant 3.200000e+01 : f32
    %78 = vector.broadcast %cst_24 : f32 to vector<4x1xf32>
    %79 = arith.divf %77, %78 : vector<4x1xf32>
    %80 = vector.broadcast %79 : vector<4x1xf32> to vector<4x32xf32>
    %81 = arith.subf %75, %80 : vector<4x32xf32>
    %82 = arith.mulf %81, %81 : vector<4x32xf32>
    %cst_25 = arith.constant dense<0.000000e+00> : vector<4xf32>
    %83 = vector.multi_reduction <add>, %82, %cst_25 [1] : vector<4x32xf32> to vector<4xf32>
    %84 = vector.shape_cast %83 : vector<4xf32> to vector<4x1xf32>
    %cst_26 = arith.constant 3.200000e+01 : f32
    %85 = vector.broadcast %cst_26 : f32 to vector<4x1xf32>
    %86 = arith.divf %84, %85 : vector<4x1xf32>
    %cst_27 = arith.constant 9.99999996E-13 : f32
    %87 = vector.broadcast %cst_27 : f32 to vector<4x1xf32>
    %88 = arith.addf %86, %87 : vector<4x1xf32>
    %89 = math.rsqrt %88 : vector<4x1xf32>
    %90 = vector.broadcast %89 : vector<4x1xf32> to vector<4x32xf32>
    %91 = arith.mulf %81, %90 : vector<4x32xf32>
    %92 = vector.extract_strided_slice %1 {offsets = [0, 96], sizes = [1, 32], strides = [1, 1]} : vector<1x128xf32> to vector<1x32xf32>
    %93 = vector.broadcast %92 : vector<1x32xf32> to vector<4x32xf32>
    %94 = arith.mulf %93, %91 : vector<4x32xf32>
    %95 = vector.extract_strided_slice %2 {offsets = [0, 96], sizes = [1, 32], strides = [1, 1]} : vector<1x128xf32> to vector<1x32xf32>
    %96 = vector.broadcast %95 : vector<1x32xf32> to vector<4x32xf32>
    %97 = arith.addf %94, %96 : vector<4x32xf32>
    %c0_28 = arith.constant 0 : index
    %c96 = arith.constant 96 : index
    %98 = vector.load %arg4[%c0_28, %c96] : memref<4x128xf32, #tpu.memory_space<vmem>>, vector<4x32xf32>
    tpu.vector_store %arg4[%c0_28, %c96], %97 {strides = array<i32>} : memref<4x128xf32, #tpu.memory_space<vmem>>, vector<4x32xf32>,
    return
  }
  func.func @transform_0(%arg0: i32) -> (i32, i32) {
    %c0_i32 = arith.constant 0 : i32
    %c0_i32_0 = arith.constant 0 : i32
    return %arg0, %c0_i32 : i32, i32
  }
  func.func @transform_1(%arg0: i32) -> (i32, i32) {
    %c0_i32 = arith.constant 0 : i32
    %c0_i32_0 = arith.constant 0 : i32
    %c0_i32_1 = arith.constant 0 : i32
    return %c0_i32, %c0_i32_0 : i32, i32
  }
  func.func @transform_2(%arg0: i32) -> (i32, i32) {
    %c0_i32 = arith.constant 0 : i32
    %c0_i32_0 = arith.constant 0 : i32
    %c0_i32_1 = arith.constant 0 : i32
    return %c0_i32, %c0_i32_0 : i32, i32
  }
  func.func @transform_3(%arg0: i32) -> (i32, i32) {
    %c0_i32 = arith.constant 0 : i32
    %c0_i32_0 = arith.constant 0 : i32
    return %arg0, %c0_i32 : i32, i32
  }
}

</mosaic_0001>

<llo_original>
// kernel: tpu_custom_call.1
$region0: #{tpu_custom_call.1}
  #allocation0 [shape = 'u32[]', space=smem, size = 0x4, offset = 0x4, fixed_abs, tag = 'smem constant byte address 0x4 - core index']
  #allocation1 [shape = 'u32[144,128]{1,0:T(1,128)}', space=vmem, size = 0x12000, scoped, tag = 'internal scratch']
  %s0 = inlined_call_operand.hbm [shape: f32[4,128], index: 0, kind: input, shape index: {}]
  %s1 = inlined_call_operand.vmem [shape: f32[1,128], index: 1, kind: input, shape index: {}]
  %s2 = inlined_call_operand.vmem [shape: f32[1,128], index: 2, kind: input, shape index: {}]
  %s3 = inlined_call_operand.hbm [shape: f32[4,128], index: 3, kind: output, shape index: {}]
  %s4 = sld [smem:[#allocation0]]
  $region26: #{tpu_custom_call.1} parent=0
    _
  %s6 = ssub.s32 1, %s4
  %s7 = scalar_select 0, %s6, %s4
  $region1: #{tpu_custom_call.1} parent=0
    #allocation2 [shape = 'u8[2048]{0}', space=vmem, size = 0x800, scoped, tag = 'input window, operand 0, single buffered']
    #allocation3 [shape = 's32[1]{0}', space=sflag, size = 0x4, scoped, tag = 'scoped memory for tpu_custom_call.1']
    #allocation4 [shape = 's32[1]{0}', space=sflag, size = 0x4, scoped, tag = 'scoped memory for tpu_custom_call.1']
    #allocation5 [shape = 'u8[2048]{0}', space=vmem, size = 0x800, scoped, tag = 'output window, operand 0, single buffered']
    %8 = vsyncpa [#allocation3], 0
    %9 = vsyncpa [#allocation4], 0
    // Predicated region
    $region2: #{tpu_custom_call.1} parent=1 // pred_check
      _
    $region3: #{tpu_custom_call.1} parent=1 // pred_check_branch
      %11 = sbr.rel (0) target = $region5
    $region4: #{tpu_custom_call.1} parent=1 // pred_region
      %s13 = ssub.s32 64, 64
      %14 = vsyncadd [#allocation3], %s13
      %s16 = sshll.u32 [#allocation2], 4
      %s17 = int_to_ptr.vmem [resolvable:$true] %s16
      %19 = dma.hbm_to_vmem [thread:$0]  %s0, 64, %s17, [#allocation3]
    $region5: #{tpu_custom_call.1} parent=1 // pred_fallthru
      _
    // Predicated region
    $region6: #{tpu_custom_call.1} parent=1 // pred_check
      _
    $region7: #{tpu_custom_call.1} parent=1 // pred_check_branch
      %21 = sbr.rel (0) target = $region9
    $region8: #{tpu_custom_call.1} parent=1 // pred_region
      _
    $region9: #{tpu_custom_call.1} parent=1 // pred_fallthru
      _
    // Predicated region
    $region10: #{tpu_custom_call.1} parent=1 // pred_check
      _
    $region11: #{tpu_custom_call.1} parent=1 // pred_check_branch
      %23 = sbr.rel (0) target = $region13
    $region12: #{tpu_custom_call.1} parent=1 // pred_region
      _
    $region13: #{tpu_custom_call.1} parent=1 // pred_fallthru
      _
    // Predicated region
    $region14: #{tpu_custom_call.1} parent=1 // pred_check
      _
    $region15: #{tpu_custom_call.1} parent=1 // pred_check_branch
      %25 = sbr.rel (0) target = $region17
    $region16: #{tpu_custom_call.1} parent=1 // pred_region
      %26 = dma.done [#allocation3], 64
    $region17: #{tpu_custom_call.1} parent=1 // pred_fallthru
      _
    %v27 = vld [vmem:[#allocation2] sm:$0xf]
    %v28 = vld [vmem:[%s1] sm:$0x1]
    %v29 = vld [vmem:[%s2] sm:$0x1]
    %vm30 = vcmask 257024
    %v31 = vsel %vm30, %v27, 0.0
    %32 = vadd.xlane.f32.xlu0 %v31
    %v33 = vpop.xlane.xlu0 %32
    %v34 = vrcp.pop 32.0
    %v35 = vmul.f32 %v33, %v34
    %v36 = vsub.f32 %v27, %v35
    %v37 = vmul.f32 %v36, %v36
    %v38 = vsel %vm30, %v37, 0.0
    %39 = vadd.xlane.f32.xlu0 %v38
    %v40 = vpop.xlane.xlu0 %39
    %v41 = vmul.f32 %v40, %v34
    %v42 = vadd.f32 %v41, 1e-12
    %v43 = vrsqrt.pop %v42
    %v44 = vmul.f32 %v36, %v43
    %v46 = vlaneseq
    %v47 = vshrl.u32 %v46, 7
    %v48 = vsub.s32 0, %v47
    %v49 = vrot.slane %v28, %v48
    %v51 = vmul.f32 %v49, %v44
    %v53 = vlaneseq
    %v54 = vshrl.u32 %v53, 7
    %v55 = vsub.s32 0, %v54
    %v56 = vrot.slane %v29, %v55
    %v58 = vadd.f32 %v51, %v56
    %59 = vst.msk [vmem:[#allocation5] sm:$0xf] %vm30, %v58
    %61 = vrot.lane.b32.xlu0 %v27, 96
    %v62 = vpop.permute.xlu0 %61
    %v64 = vsel %vm30, %v62, 0.0
    %65 = vadd.xlane.f32.xlu0 %v64
    %v66 = vpop.xlane.xlu0 %65
    %v67 = vmul.f32 %v66, %v34
    %v68 = vsub.f32 %v27, %v67
    %v69 = vmul.f32 %v68, %v68
    %71 = vrot.lane.b32.xlu0 %v69, 96
    %v72 = vpop.permute.xlu0 %71
    %v74 = vsel %vm30, %v72, 0.0
    %75 = vadd.xlane.f32.xlu0 %v74
    %v76 = vpop.xlane.xlu0 %75
    %v77 = vmul.f32 %v76, %v34
    %v78 = vadd.f32 %v77, 1e-12
    %v79 = vrsqrt.pop %v78
    %v80 = vmul.f32 %v68, %v79
    %v81 = vmul.f32 %v49, %v80
    %v82 = vadd.f32 %v81, %v56
    %vm83 = vcmask 519424
    %84 = vst.msk [vmem:[#allocation5] sm:$0xf] %vm83, %v82
    %85 = vrot.lane.b32.xlu0 %v27, 64
    %v86 = vpop.permute.xlu0 %85
    %v88 = vsel %vm30, %v86, 0.0
    %89 = vadd.xlane.f32.xlu0 %v88
    %v90 = vpop.xlane.xlu0 %89
    %v91 = vmul.f32 %v90, %v34
    %v92 = vsub.f32 %v27, %v91
    %v93 = vmul.f32 %v92, %v92
    %95 = vrot.lane.b32.xlu0 %v93, 64
    %v96 = vpop.permute.xlu0 %95
    %v98 = vsel %vm30, %v96, 0.0
    %99 = vadd.xlane.f32.xlu0 %v98
    %v100 = vpop.xlane.xlu0 %99
    %v101 = vmul.f32 %v100, %v34
    %v102 = vadd.f32 %v101, 1e-12
    %v103 = vrsqrt.pop %v102
    %v104 = vmul.f32 %v92, %v103
    %v105 = vmul.f32 %v49, %v104
    %v106 = vadd.f32 %v105, %v56
    %vm107 = vcmask 781824
    %108 = vst.msk [vmem:[#allocation5] sm:$0xf] %vm107, %v106
    %109 = vrot.lane.b32.xlu0 %v27, 32
    %v110 = vpop.permute.xlu0 %109
    %v112 = vsel %vm30, %v110, 0.0
    %113 = vadd.xlane.f32.xlu0 %v112
    %v114 = vpop.xlane.xlu0 %113
    %v115 = vmul.f32 %v114, %v34
    %v116 = vsub.f32 %v27, %v115
    %v117 = vmul.f32 %v116, %v116
    %119 = vrot.lane.b32.xlu0 %v117, 32
    %v120 = vpop.permute.xlu0 %119
    %v122 = vsel %vm30, %v120, 0.0
    %123 = vadd.xlane.f32.xlu0 %v122
    %v124 = vpop.xlane.xlu0 %123
    %v125 = vmul.f32 %v124, %v34
    %v126 = vadd.f32 %v125, 1e-12
    %v127 = vrsqrt.pop %v126
    %v128 = vmul.f32 %v116, %v127
    %v129 = vmul.f32 %v49, %v128
    %v130 = vadd.f32 %v129, %v56
    %vm131 = vcmask 1044224
    %132 = vst.msk [vmem:[#allocation5] sm:$0xf] %vm131, %v130
    // Predicated region
    $region18: #{tpu_custom_call.1} parent=1 // pred_check
      _
    $region19: #{tpu_custom_call.1} parent=1 // pred_check_branch
      %134 = sbr.rel (0) target = $region21
    $region20: #{tpu_custom_call.1} parent=1 // pred_region
      %s136 = ssub.s32 64, 64
      %137 = vsyncadd [#allocation4], %s136
      %s139 = sshll.u32 [#allocation5], 4
      %s140 = int_to_ptr.vmem [resolvable:$true] %s139
      %142 = dma.vmem_to_hbm [thread:$0]  %s140, 64, %s3, [#allocation4]
    $region21: #{tpu_custom_call.1} parent=1 // pred_fallthru
      _
    // Predicated region
    $region22: #{tpu_custom_call.1} parent=1 // pred_check
      _
    $region23: #{tpu_custom_call.1} parent=1 // pred_check_branch
      %144 = sbr.rel (0) target = $region25
    $region24: #{tpu_custom_call.1} parent=1 // pred_region
      %145 = dma.done [#allocation4], 64
    $region25: #{tpu_custom_call.1} parent=1 // pred_fallthru
      _
    %146 = vsyncpa [#allocation3], 1
    %147 = vsyncpa [#allocation4], 1

</llo_original>
